<compile_context>
chip_gen: v6e
topology: v6e:2x2x1
jax: 0.10.0
libtpu: 0.0.40
codegen_flags: <defaults>
</compile_context>

<pallas_src>
import jax
import jax.numpy as jnp
from jax.experimental import pallas as pl
from jax.experimental.pallas import tpu as pltpu


def critic_kernel(x_ref, w1_ref, b1_ref, w2_ref, b2_ref, o_ref):
    B, K = x_ref.shape                 # (batch, state_dim), static
    x = x_ref[...]                     # (B, K)      f32
    w1 = w1_ref[...]                   # (K, 256)    f32
    # fc1 as K broadcast multiply-adds on the VPU (K is tiny; MXU would be
    # almost entirely zero-padded). b1 broadcasts over the batch.
    h = jnp.broadcast_to(b1_ref[...], (B, w1.shape[1])).astype(jnp.float32)
    for k in range(K):                 # static unroll, K = state_dim
        h = h + x[:, k:k + 1] * w1[k:k + 1, :]
    h = jnp.maximum(h, 0.0)
    # fc2: w2 is a (1, 256) row -> broadcast multiply (VPU) + lane reduce (XLU).
    v = jnp.sum(h * w2_ref[...], axis=-1, keepdims=True)     # (B, 1)
    o_ref[...] = (v + b2_ref[0, 0]).astype(o_ref.dtype)      # b2 scalar from SMEM


def critic_forward(x, w1, b1, w2, b2):
    """x: (B, state_dim); w1: (state_dim, 256); b1: (1, 256);
    w2: (256, 1); b2: (1, 1).  Returns (B, 1) value estimates."""
    B = x.shape[0]
    w2_row = w2.reshape(1, -1)  # (1, 256) row for the in-kernel lane reduction
    return pl.pallas_call(
        critic_kernel,
        out_shape=jax.ShapeDtypeStruct((B, 1), jnp.float32),
        in_specs=[
            pl.BlockSpec(memory_space=pltpu.MemorySpace.VMEM),   # x
            pl.BlockSpec(memory_space=pltpu.MemorySpace.VMEM),   # w1
            pl.BlockSpec(memory_space=pltpu.MemorySpace.VMEM),   # b1
            pl.BlockSpec(memory_space=pltpu.MemorySpace.VMEM),   # w2 row
            pl.BlockSpec(memory_space=pltpu.MemorySpace.SMEM),   # b2 scalar
        ],
        out_specs=pl.BlockSpec(memory_space=pltpu.MemorySpace.VMEM),
    )(x, w1, b1, w2_row, b2)


def init_params(key, state_dim, hidden=256):
    # Deterministic synthetic init (PyTorch-Linear-like uniform bounds).
    k1, k2, k3, k4 = jax.random.split(key, 4)
    bound1 = 1.0 / jnp.sqrt(state_dim)
    bound2 = 1.0 / jnp.sqrt(hidden)
    w1 = jax.random.uniform(k1, (state_dim, hidden), jnp.float32, -bound1, bound1)
    b1 = jax.random.uniform(k2, (1, hidden), jnp.float32, -bound1, bound1)
    w2 = jax.random.uniform(k3, (hidden, 1), jnp.float32, -bound2, bound2)
    b2 = jax.random.uniform(k4, (1, 1), jnp.float32, -bound2, bound2)
    return w1, b1, w2, b2


if __name__ == "__main__":
    key = jax.random.PRNGKey(0)
    state_dim = 3          # pendulum observation: [cos(theta), sin(theta), theta_dot]
    batch = 8

    kx, kp = jax.random.split(key)
    x = jax.random.normal(kx, (batch, state_dim), jnp.float32)
    w1, b1, w2, b2 = init_params(kp, state_dim)

    out = critic_forward(x, w1, b1, w2, b2)
    out = jax.block_until_ready(out)

    # Pure-JAX reference check of the forward-pass semantics.
    ref = jnp.maximum(x @ w1 + b1, 0.0) @ w2 + b2
    assert out.shape == (batch, 1)
    assert jnp.allclose(out, ref, atol=1e-5, rtol=1e-5)

    # TODO(synk): train_net (MSE loss + Adam step) is host-side training logic,
    # not part of the forward kernel.
    print("KERNEL_OK")
</pallas_src>

<mosaic_0001>
module attributes {stable_mosaic.version = 11 : i64} {
  func.func @critic_kernel(%arg0: memref<8x3xf32, #tpu.memory_space<vmem>>, %arg1: memref<3x256xf32, #tpu.memory_space<vmem>>, %arg2: memref<1x256xf32, #tpu.memory_space<vmem>>, %arg3: memref<1x256xf32, #tpu.memory_space<vmem>>, %arg4: memref<1x1xf32, #tpu.memory_space<smem>>, %arg5: memref<8x1xf32, #tpu.memory_space<vmem>>) attributes {dimension_semantics = [], scalar_prefetch = 0 : i64, scratch_operands = 0 : i64, tpu.core_type = #tpu.core_type<tc>} {
    %c0 = arith.constant 0 : index
    %c0_0 = arith.constant 0 : index
    %0 = vector.load %arg0[%c0, %c0_0] : memref<8x3xf32, #tpu.memory_space<vmem>>, vector<8x3xf32>
    %c0_1 = arith.constant 0 : index
    %c0_2 = arith.constant 0 : index
    %1 = vector.load %arg1[%c0_1, %c0_2] : memref<3x256xf32, #tpu.memory_space<vmem>>, vector<3x256xf32>
    %c0_3 = arith.constant 0 : index
    %c0_4 = arith.constant 0 : index
    %2 = vector.load %arg2[%c0_3, %c0_4] : memref<1x256xf32, #tpu.memory_space<vmem>>, vector<1x256xf32>
    %3 = vector.shape_cast %2 : vector<1x256xf32> to vector<1x256xf32>
    %4 = vector.broadcast %3 : vector<1x256xf32> to vector<8x256xf32>
    %5 = vector.extract_strided_slice %0 {offsets = [0, 0], sizes = [8, 1], strides = [1, 1]} : vector<8x3xf32> to vector<8x1xf32>
    %6 = vector.extract_strided_slice %1 {offsets = [0, 0], sizes = [1, 256], strides = [1, 1]} : vector<3x256xf32> to vector<1x256xf32>
    %7 = vector.broadcast %5 : vector<8x1xf32> to vector<8x256xf32>
    %8 = vector.broadcast %6 : vector<1x256xf32> to vector<8x256xf32>
    %9 = arith.mulf %7, %8 : vector<8x256xf32>
    %10 = arith.addf %4, %9 : vector<8x256xf32>
    %11 = vector.extract_strided_slice %0 {offsets = [0, 1], sizes = [8, 1], strides = [1, 1]} : vector<8x3xf32> to vector<8x1xf32>
    %12 = vector.extract_strided_slice %1 {offsets = [1, 0], sizes = [1, 256], strides = [1, 1]} : vector<3x256xf32> to vector<1x256xf32>
    %13 = vector.broadcast %11 : vector<8x1xf32> to vector<8x256xf32>
    %14 = vector.broadcast %12 : vector<1x256xf32> to vector<8x256xf32>
    %15 = arith.mulf %13, %14 : vector<8x256xf32>
    %16 = arith.addf %10, %15 : vector<8x256xf32>
    %17 = vector.extract_strided_slice %0 {offsets = [0, 2], sizes = [8, 1], strides = [1, 1]} : vector<8x3xf32> to vector<8x1xf32>
    %18 = vector.extract_strided_slice %1 {offsets = [2, 0], sizes = [1, 256], strides = [1, 1]} : vector<3x256xf32> to vector<1x256xf32>
    %19 = vector.broadcast %17 : vector<8x1xf32> to vector<8x256xf32>
    %20 = vector.broadcast %18 : vector<1x256xf32> to vector<8x256xf32>
    %21 = arith.mulf %19, %20 : vector<8x256xf32>
    %22 = arith.addf %16, %21 : vector<8x256xf32>
    %cst = arith.constant 0.000000e+00 : f32
    %23 = vector.broadcast %cst : f32 to vector<8x256xf32>
    %24 = arith.maximumf %22, %23 : vector<8x256xf32>
    %c0_5 = arith.constant 0 : index
    %c0_6 = arith.constant 0 : index
    %25 = vector.load %arg3[%c0_5, %c0_6] : memref<1x256xf32, #tpu.memory_space<vmem>>, vector<1x256xf32>
    %26 = vector.broadcast %25 : vector<1x256xf32> to vector<8x256xf32>
    %27 = arith.mulf %24, %26 : vector<8x256xf32>
    %cst_7 = arith.constant dense<0.000000e+00> : vector<8xf32>
    %28 = vector.multi_reduction <add>, %27, %cst_7 [1] : vector<8x256xf32> to vector<8xf32>
    %29 = vector.shape_cast %28 : vector<8xf32> to vector<8x1xf32>
    %c0_8 = arith.constant 0 : index
    %c0_9 = arith.constant 0 : index
    %30 = memref.load %arg4[%c0_8, %c0_9] : memref<1x1xf32, #tpu.memory_space<smem>>
    %31 = vector.broadcast %30 : f32 to vector<8x1xf32>
    %32 = arith.addf %29, %31 : vector<8x1xf32>
    %c0_10 = arith.constant 0 : index
    %c0_11 = arith.constant 0 : index
    %33 = vector.load %arg5[%c0_10, %c0_11] : memref<8x1xf32, #tpu.memory_space<vmem>>, vector<8x1xf32>
    tpu.vector_store %arg5[%c0_10, %c0_11], %32 {strides = array<i32>} : memref<8x1xf32, #tpu.memory_space<vmem>>, vector<8x1xf32>,
    return
  }
}

</mosaic_0001>

<llo_original>
// kernel: tpu_custom_call.1
$region0: #{tpu_custom_call.1}
  #allocation0 [shape = 'u32[]', space=smem, size = 0x4, offset = 0x4, fixed_abs, tag = 'smem constant byte address 0x4 - core index']
  #allocation1 [shape = 'u32[144,128]{1,0:T(1,128)}', space=vmem, size = 0x12000, scoped, tag = 'internal scratch']
  #allocation2 [shape = 'f32[1,1]{1,0:T(1,128)S(6)}', space=smem, size = 0x200, scoped, tag = 'scoped memory for tpu_custom_call.1']
  %s0 = inlined_call_operand.vmem [shape: f32[8,3], index: 0, kind: input, shape index: {}]
  %s1 = inlined_call_operand.vmem [shape: f32[3,256], index: 1, kind: input, shape index: {}]
  %s2 = inlined_call_operand.vmem [shape: f32[1,256], index: 2, kind: input, shape index: {}]
  %s3 = inlined_call_operand.vmem [shape: f32[1,256], index: 3, kind: input, shape index: {}]
  %s4 = inlined_call_operand.<no memory space> [shape: f32[1,1], index: 4, kind: input, shape index: {}]
  %s5 = inlined_call_operand.vmem [shape: f32[8,1], index: 5, kind: output, shape index: {}]
  %s6 = sld [smem:[#allocation0]]
  $region30: #{tpu_custom_call.1} parent=0
    _
  %s8 = ssub.s32 1, %s6
  %s9 = scalar_select 0, %s8, %s6
  %10 = sst [smem:[#allocation2]] %s4
  // Predicated region
  $region2: #{tpu_custom_call.1} parent=0 // pred_check
    _
  $region3: #{tpu_custom_call.1} parent=0 // pred_check_branch
    %12 = sbr.rel (0) target = $region5
  $region4: #{tpu_custom_call.1} parent=0 // pred_region
    _
  $region5: #{tpu_custom_call.1} parent=0 // pred_fallthru
    _
  // Predicated region
  $region6: #{tpu_custom_call.1} parent=0 // pred_check
    _
  $region7: #{tpu_custom_call.1} parent=0 // pred_check_branch
    %14 = sbr.rel (0) target = $region9
  $region8: #{tpu_custom_call.1} parent=0 // pred_region
    _
  $region9: #{tpu_custom_call.1} parent=0 // pred_fallthru
    _
  // Predicated region
  $region10: #{tpu_custom_call.1} parent=0 // pred_check
    _
  $region11: #{tpu_custom_call.1} parent=0 // pred_check_branch
    %16 = sbr.rel (0) target = $region13
  $region12: #{tpu_custom_call.1} parent=0 // pred_region
    _
  $region13: #{tpu_custom_call.1} parent=0 // pred_fallthru
    _
  // Predicated region
  $region14: #{tpu_custom_call.1} parent=0 // pred_check
    _
  $region15: #{tpu_custom_call.1} parent=0 // pred_check_branch
    %18 = sbr.rel (0) target = $region17
  $region16: #{tpu_custom_call.1} parent=0 // pred_region
    _
  $region17: #{tpu_custom_call.1} parent=0 // pred_fallthru
    _
  // Predicated region
  $region18: #{tpu_custom_call.1} parent=0 // pred_check
    _
  $region19: #{tpu_custom_call.1} parent=0 // pred_check_branch
    %20 = sbr.rel (0) target = $region21
  $region20: #{tpu_custom_call.1} parent=0 // pred_region
    _
  $region21: #{tpu_custom_call.1} parent=0 // pred_fallthru
    _
  %v21 = vld [vmem:[%s0] sm:$0xff]
  %v22 = vld [vmem:[%s1] sm:$0x77]
  %v23 = vld [vmem:[%s2] sm:$0x3]
  %v25 = vlaneseq
  %v26 = vshrl.u32 %v25, 7
  %v27 = vsub.s32 0, %v26
  %v28 = vrot.slane %v23, %v27
  %v29 = vlaneseq
  %v30 = vshrl.u32 %v29, 7
  %v31 = vsub.s32 1, %v30
  %v32 = vrot.slane %v23, %v31
  %36 = vset.pattern.permute.xlu0 0
  %37 = vperm.xlu0 %36, %v21
  %v38 = vpop.permute.xlu0 %37
  %v41 = vlaneseq
  %v42 = vshrl.u32 %v41, 7
  %v43 = vsub.s32 0, %v42
  %v44 = vrot.slane %v22, %v43
  %v45 = vlaneseq
  %v46 = vshrl.u32 %v45, 7
  %v47 = vsub.s32 4, %v46
  %v48 = vrot.slane %v22, %v47
  %v51 = vlaneseq
  %v52 = vshrl.u32 %v51, 7
  %v53 = vsub.s32 0, %v52
  %v54 = vrot.slane %v44, %v53
  %v55 = vlaneseq
  %v56 = vshrl.u32 %v55, 7
  %v57 = vsub.s32 0, %v56
  %v58 = vrot.slane %v48, %v57
  %v59 = vmul.f32 %v38, %v54
  %v60 = vmul.f32 %v38, %v58
  %v61 = vadd.f32 %v28, %v59
  %v62 = vadd.f32 %v32, %v60
  %63 = vset.pattern.permute.xlu0 1
  %64 = vperm.xlu0 %63, %v21
  %v65 = vpop.permute.xlu0 %64
  %v67 = vlaneseq
  %v68 = vshrl.u32 %v67, 7
  %v69 = vsub.s32 1, %v68
  %v70 = vrot.slane %v22, %v69
  %v71 = vlaneseq
  %v72 = vshrl.u32 %v71, 7
  %v73 = vsub.s32 5, %v72
  %v74 = vrot.slane %v22, %v73
  %v77 = vlaneseq
  %v78 = vshrl.u32 %v77, 7
  %v79 = vsub.s32 1, %v78
  %v80 = vrot.slane %v70, %v79
  %v81 = vlaneseq
  %v82 = vshrl.u32 %v81, 7
  %v83 = vsub.s32 1, %v82
  %v84 = vrot.slane %v74, %v83
  %v85 = vmul.f32 %v65, %v80
  %v86 = vmul.f32 %v65, %v84
  %v87 = vadd.f32 %v61, %v85
  %v88 = vadd.f32 %v62, %v86
  %89 = vset.pattern.permute.xlu0 2
  %90 = vperm.xlu0 %89, %v21
  %v91 = vpop.permute.xlu0 %90
  %v93 = vlaneseq
  %v94 = vshrl.u32 %v93, 7
  %v95 = vsub.s32 2, %v94
  %v96 = vrot.slane %v22, %v95
  %v97 = vlaneseq
  %v98 = vshrl.u32 %v97, 7
  %v99 = vsub.s32 6, %v98
  %v100 = vrot.slane %v22, %v99
  %v103 = vlaneseq
  %v104 = vshrl.u32 %v103, 7
  %v105 = vsub.s32 2, %v104
  %v106 = vrot.slane %v96, %v105
  %v107 = vlaneseq
  %v108 = vshrl.u32 %v107, 7
  %v109 = vsub.s32 2, %v108
  %v110 = vrot.slane %v100, %v109
  %v111 = vmul.f32 %v91, %v106
  %v112 = vmul.f32 %v91, %v110
  %v113 = vadd.f32 %v87, %v111
  %v114 = vadd.f32 %v88, %v112
  %v115 = vmax.f32 %v113, 0.0
  %v116 = vmax.f32 %v114, 0.0
  %v117 = vld [vmem:[%s3] sm:$0x3]
  %v119 = vlaneseq
  %v120 = vshrl.u32 %v119, 7
  %v121 = vsub.s32 0, %v120
  %v122 = vrot.slane %v117, %v121
  %v123 = vlaneseq
  %v124 = vshrl.u32 %v123, 7
  %v125 = vsub.s32 1, %v124
  %v126 = vrot.slane %v117, %v125
  %v129 = vmul.f32 %v115, %v122
  %v130 = vmul.f32 %v116, %v126
  %v131 = vadd.f32 %v129, %v130
  %132 = vadd.xlane.f32.xlu0 %v131
  %v133 = vpop.xlane.xlu0 %132
  %s134 = sld [smem:[#allocation2]]
  %v135 = vstv %s134
  %v136 = vadd.f32 %v133, %v135
  %vm137 = vcmask 7168
  %138 = vst.msk [vmem:[%s5] sm:$0xff] %vm137, %v136
  // Predicated region
  $region22: #{tpu_custom_call.1} parent=0 // pred_check
    _
  $region23: #{tpu_custom_call.1} parent=0 // pred_check_branch
    %140 = sbr.rel (0) target = $region25
  $region24: #{tpu_custom_call.1} parent=0 // pred_region
    _
  $region25: #{tpu_custom_call.1} parent=0 // pred_fallthru
    _
  // Predicated region
  $region26: #{tpu_custom_call.1} parent=0 // pred_check
    _
  $region27: #{tpu_custom_call.1} parent=0 // pred_check_branch
    %142 = sbr.rel (0) target = $region29
  $region28: #{tpu_custom_call.1} parent=0 // pred_region
    _
  $region29: #{tpu_custom_call.1} parent=0 // pred_fallthru
    _

</llo_original>
